<compile_context>
chip_gen: v7x
topology: tpu7x:2x2x1
jax: 0.10.0
libtpu: 0.0.40
codegen_flags: <defaults>
</compile_context>

<pallas_src>
import math
import functools

import jax
import jax.numpy as jnp
from jax.experimental import pallas as pl
from jax.experimental.pallas import tpu as pltpu


# Large finite negative (flash-attention convention) instead of -inf: avoids NaN rows
# when a query row is fully masked; exp() of it still underflows to exactly 0.
DEFAULT_MASK_VALUE = -0.7 * float(jnp.finfo(jnp.float32).max)


def _flash_attend_kernel(q_ref, k_ref, v_ref, mask_ref, o_ref,
                         m_scr, l_scr, acc_scr, *, scale, num_heads, head_dim):
    """One (batch, q-tile, kv-tile) step of flash attention over all heads.

    q_ref:    (H, tq, Dh)  -- resident across the kv axis (index_map ignores kv)
    k_ref:    (H, tk, Dh)
    v_ref:    (H, tk, Dh)
    mask_ref: (tq, tk)     -- additive f32 mask tile (0 or DEFAULT_MASK_VALUE)
    o_ref:    (tq, H*Dh)   -- heads merged into lanes; written once, at the last kv step
    scratch:  m (H,tq,1), l (H,tq,1), acc (H,tq,Dh), all f32
    """
    kv_idx = pl.program_id(2)

    @pl.when(kv_idx == 0)
    def _init():
        m_scr[...] = jnp.full_like(m_scr, -jnp.inf)
        l_scr[...] = jnp.zeros_like(l_scr)
        acc_scr[...] = jnp.zeros_like(acc_scr)

    # Native dtype on the MXU; fold the softmax scale into q once per tile.
    q = q_ref[...] * scale                    # (H, tq, Dh)
    k = k_ref[...]                            # (H, tk, Dh)
    v = v_ref[...]                            # (H, tk, Dh)

    # scores (H, tq, tk): batched contraction over Dh (no explicit k.T), f32 accumulate.
    s = jnp.einsum("hqd,hkd->hqk", q, k, preferred_element_type=jnp.float32)
    s = s + mask_ref[...][None, :, :]

    # --- online softmax update ---
    m_prev = m_scr[...]                                           # (H, tq, 1)
    m_new = jnp.maximum(m_prev, jnp.max(s, axis=-1, keepdims=True))
    alpha = jnp.exp(m_prev - m_new)                               # rescale factor
    p = jnp.exp(s - m_new)                                        # (H, tq, tk) f32

    l_scr[...] = alpha * l_scr[...] + jnp.sum(p, axis=-1, keepdims=True)
    acc_scr[...] = alpha * acc_scr[...] + jnp.einsum(
        "hqk,hkd->hqd", p.astype(v.dtype), v,
        preferred_element_type=jnp.float32)
    m_scr[...] = m_new

    @pl.when(kv_idx == pl.num_programs(2) - 1)
    def _finalize():
        # Late normalization: reciprocal on (H, tq, 1) via EUP, applied to (H, tq, Dh).
        inv_l = pl.reciprocal(l_scr[...], approx=True)            # (H, tq, 1)
        out = acc_scr[...] * inv_l                                # (H, tq, Dh) f32
        # Merge heads into the lane dim in-kernel -> single (tq, H*Dh) lane-dense store,
        # output leaves the kernel already in (B, T, d_out) layout (no wrapper transpose).
        merged = jnp.concatenate(
            [out[h] for h in range(num_heads)], axis=-1)          # (tq, H*Dh)
        o_ref[...] = merged.astype(o_ref.dtype)


def attend_forward(qkv, attn_mask, *, num_heads, head_dim, d_out,
                   block_q=128, block_k=128):
    """Pallas implementation of Attend.forward (eval mode).

    qkv:       (B, T, 3 * num_heads * head_dim)
    attn_mask: (T, T) boolean, True = attend, False = masked out
    returns:   (B, T, d_out)
    """
    B, T, E = qkv.shape
    assert E == 3 * num_heads * head_dim
    assert d_out == num_heads * head_dim

    H, Dh = num_heads, head_dim
    tq = min(block_q, T)
    tk = min(block_k, T)
    assert T % tq == 0 and T % tk == 0, "T must divide the q/kv tile sizes"

    # --- glue: split fused qkv into q/k/v (B, H, T, Dh); one fused XLA pass. ---
    # TODO(synk): could be folded into BlockSpec index_maps on the (B,T,3,H,Dh) view to
    # remove this HBM round trip, at the cost of an in-kernel head-axis relayout.
    qkv5 = jnp.transpose(qkv.reshape(B, T, 3, H, Dh), (2, 0, 3, 1, 4))
    q, k, v = qkv5[0], qkv5[1], qkv5[2]

    # bool mask -> additive f32 mask tileable as (tq, tk) blocks.
    add_mask = jnp.where(attn_mask, 0.0, DEFAULT_MASK_VALUE).astype(jnp.float32)

    scale = 1.0 / math.sqrt(head_dim)
    grid = (B, T // tq, T // tk)

    q_spec = pl.BlockSpec((pl.Squeezed(), H, tq, Dh),
                          lambda b, qi, ki: (b, 0, qi, 0))
    kv_spec = pl.BlockSpec((pl.Squeezed(), H, tk, Dh),
                           lambda b, qi, ki: (b, 0, ki, 0))
    mask_spec = pl.BlockSpec((tq, tk), lambda b, qi, ki: (qi, ki))
    # Output already in (B, T, d_out) layout: heads merged into lanes inside the kernel.
    out_spec = pl.BlockSpec((pl.Squeezed(), tq, d_out),
                            lambda b, qi, ki: (b, qi, 0))

    kernel = functools.partial(_flash_attend_kernel, scale=scale,
                               num_heads=H, head_dim=Dh)

    out = pl.pallas_call(
        kernel,
        out_shape=jax.ShapeDtypeStruct((B, T, d_out), qkv.dtype),
        grid_spec=pltpu.PrefetchScalarGridSpec(
            num_scalar_prefetch=0,
            grid=grid,
            in_specs=[q_spec, kv_spec, kv_spec, mask_spec],
            out_specs=out_spec,
            scratch_shapes=[
                pltpu.VMEM((H, tq, 1), jnp.float32),   # running max m
                pltpu.VMEM((H, tq, 1), jnp.float32),   # running sum l
                pltpu.VMEM((H, tq, Dh), jnp.float32),  # output accumulator
            ],
        ),
        compiler_params=pltpu.CompilerParams(
            dimension_semantics=("parallel", "parallel", "arbitrary"),
        ),
    )(q, k, v, add_mask)                               # (B, T, d_out)

    return out


def _reference(qkv, attn_mask, *, num_heads, head_dim, d_out):
    B, T, _ = qkv.shape
    qkv5 = jnp.transpose(qkv.reshape(B, T, 3, num_heads, head_dim), (2, 0, 3, 1, 4))
    q, k, v = qkv5[0], qkv5[1], qkv5[2]
    s = jnp.einsum("bhqd,bhkd->bhqk", q, k) / math.sqrt(head_dim)
    s = jnp.where(attn_mask[None, None], s, -jnp.inf)
    p = jax.nn.softmax(s, axis=-1)
    o = jnp.einsum("bhqk,bhkd->bhqd", p, v)
    return jnp.transpose(o, (0, 2, 1, 3)).reshape(B, T, d_out)


if __name__ == "__main__":
    # Small deterministic config consistent with the module's forward.
    num_heads = 2
    head_dim = 16
    d_out = num_heads * head_dim      # 32
    B, T = 2, 8
    embed_dim = 3 * d_out             # fused qkv: 96

    key = jax.random.PRNGKey(0)
    qkv = jax.random.normal(key, (B, T, embed_dim), dtype=jnp.float32)
    # Non-trivial boolean mask (lower-triangular causal-style), broadcast over B/H.
    attn_mask = jnp.tril(jnp.ones((T, T), dtype=bool))

    out = attend_forward(qkv, attn_mask,
                         num_heads=num_heads, head_dim=head_dim, d_out=d_out)
    out = jax.block_until_ready(out)

    ref = _reference(qkv, attn_mask,
                     num_heads=num_heads, head_dim=head_dim, d_out=d_out)
    assert out.shape == (B, T, d_out)
    # Tolerance: approx reciprocal (~1e-3 rel) and MXU default-precision matmuls.
    assert jnp.allclose(out, ref, atol=2e-2, rtol=2e-2), "mismatch vs reference"

    print("KERNEL_OK")
</pallas_src>

<mosaic_0001>
module attributes {stable_mosaic.version = 11 : i64} {
  func.func @_flash_attend_kernel(%arg0: i32, %arg1: i32, %arg2: i32, %arg3: memref<1x2x8x16xf32, #tpu.memory_space<vmem>>, %arg4: memref<1x2x8x16xf32, #tpu.memory_space<vmem>>, %arg5: memref<1x2x8x16xf32, #tpu.memory_space<vmem>>, %arg6: memref<8x8xf32, #tpu.memory_space<vmem>>, %arg7: memref<1x8x32xf32, #tpu.memory_space<vmem>>, %arg8: memref<2x8x1xf32, #tpu.memory_space<vmem>>, %arg9: memref<2x8x1xf32, #tpu.memory_space<vmem>>, %arg10: memref<2x8x16xf32, #tpu.memory_space<vmem>>) attributes {dimension_semantics = [#tpu.dimension_semantics<parallel>, #tpu.dimension_semantics<parallel>, #tpu.dimension_semantics<arbitrary>], iteration_bounds = array<i64: 2, 1, 1>, scalar_prefetch = 0 : i64, scratch_operands = 3 : i64, tpu.core_type = #tpu.core_type<tc>, window_params = [{transform_indices = @transform_0, window_bounds = array<i64: 1, 2, 8, 16>}, {transform_indices = @transform_1, window_bounds = array<i64: 1, 2, 8, 16>}, {transform_indices = @transform_2, window_bounds = array<i64: 1, 2, 8, 16>}, {transform_indices = @transform_3, window_bounds = array<i64: 8, 8>}, {transform_indices = @transform_4, window_bounds = array<i64: 1, 8, 32>}]} {
    %c0_i32 = arith.constant 0 : i32
    %0 = arith.cmpi eq, %arg2, %c0_i32 : i32
    %1 = arith.extui %0 : i1 to i32
    %c0_i32_0 = arith.constant 0 : i32
    %2 = arith.cmpi ne, %1, %c0_i32_0 : i32
    scf.if %2 {
      %cst_38 = arith.constant 0xFF800000 : f32
      %41 = vector.broadcast %cst_38 : f32 to vector<2x8x1xf32>
      %c0_39 = arith.constant 0 : index
      %c0_40 = arith.constant 0 : index
      %c0_41 = arith.constant 0 : index
      %42 = vector.load %arg8[%c0_39, %c0_40, %c0_41] : memref<2x8x1xf32, #tpu.memory_space<vmem>>, vector<2x8x1xf32>
      tpu.vector_store %arg8[%c0_39, %c0_40, %c0_41], %41 {strides = array<i32>} : memref<2x8x1xf32, #tpu.memory_space<vmem>>, vector<2x8x1xf32>,
      %cst_42 = arith.constant 0.000000e+00 : f32
      %43 = vector.broadcast %cst_42 : f32 to vector<2x8x1xf32>
      %c0_43 = arith.constant 0 : index
      %c0_44 = arith.constant 0 : index
      %c0_45 = arith.constant 0 : index
      %44 = vector.load %arg9[%c0_43, %c0_44, %c0_45] : memref<2x8x1xf32, #tpu.memory_space<vmem>>, vector<2x8x1xf32>
      tpu.vector_store %arg9[%c0_43, %c0_44, %c0_45], %43 {strides = array<i32>} : memref<2x8x1xf32, #tpu.memory_space<vmem>>, vector<2x8x1xf32>,
      %cst_46 = arith.constant 0.000000e+00 : f32
      %45 = vector.broadcast %cst_46 : f32 to vector<2x8x16xf32>
      %c0_47 = arith.constant 0 : index
      %c0_48 = arith.constant 0 : index
      %c0_49 = arith.constant 0 : index
      %46 = vector.load %arg10[%c0_47, %c0_48, %c0_49] : memref<2x8x16xf32, #tpu.memory_space<vmem>>, vector<2x8x16xf32>
      tpu.vector_store %arg10[%c0_47, %c0_48, %c0_49], %45 {strides = array<i32>} : memref<2x8x16xf32, #tpu.memory_space<vmem>>, vector<2x8x16xf32>,
    } else {
    }
    %c0 = arith.constant 0 : index
    %c0_1 = arith.constant 0 : index
    %c0_2 = arith.constant 0 : index
    %c0_3 = arith.constant 0 : index
    %3 = vector.load %arg3[%c0, %c0_1, %c0_2, %c0_3] : memref<1x2x8x16xf32, #tpu.memory_space<vmem>>, vector<1x2x8x16xf32>
    %4 = vector.shape_cast %3 : vector<1x2x8x16xf32> to vector<2x8x16xf32>
    %cst = arith.constant 2.500000e-01 : f32
    %5 = vector.broadcast %cst : f32 to vector<2x8x16xf32>
    %6 = arith.mulf %4, %5 : vector<2x8x16xf32>
    %c0_4 = arith.constant 0 : index
    %c0_5 = arith.constant 0 : index
    %c0_6 = arith.constant 0 : index
    %c0_7 = arith.constant 0 : index
    %7 = vector.load %arg4[%c0_4, %c0_5, %c0_6, %c0_7] : memref<1x2x8x16xf32, #tpu.memory_space<vmem>>, vector<1x2x8x16xf32>
    %8 = vector.shape_cast %7 : vector<1x2x8x16xf32> to vector<2x8x16xf32>
    %c0_8 = arith.constant 0 : index
    %c0_9 = arith.constant 0 : index
    %c0_10 = arith.constant 0 : index
    %c0_11 = arith.constant 0 : index
    %9 = vector.load %arg5[%c0_8, %c0_9, %c0_10, %c0_11] : memref<1x2x8x16xf32, #tpu.memory_space<vmem>>, vector<1x2x8x16xf32>
    %10 = vector.shape_cast %9 : vector<1x2x8x16xf32> to vector<2x8x16xf32>
    "tpu.trace_start"() <{level = 10 : i32, message = "hqd,hkd->hqk"}> : () -> ()
    %cst_12 = arith.constant dense<0.000000e+00> : vector<2x8x8xf32>
    %11 = tpu.matmul %6, %8, %cst_12 {dimension_numbers = #tpu.dot_dimension_numbers<[2], [2], [1], [1], [0, 0, 0, 1, 1, 1], [0], [0]>} : vector<2x8x16xf32>, vector<2x8x16xf32>, vector<2x8x8xf32> -> vector<2x8x8xf32>
    "tpu.trace_stop"() : () -> ()
    %c0_13 = arith.constant 0 : index
    %c0_14 = arith.constant 0 : index
    %12 = vector.load %arg6[%c0_13, %c0_14] : memref<8x8xf32, #tpu.memory_space<vmem>>, vector<8x8xf32>
    %13 = vector.shape_cast %12 : vector<8x8xf32> to vector<1x8x8xf32>
    %14 = vector.broadcast %13 : vector<1x8x8xf32> to vector<2x8x8xf32>
    %15 = arith.addf %11, %14 : vector<2x8x8xf32>
    %c0_15 = arith.constant 0 : index
    %c0_16 = arith.constant 0 : index
    %c0_17 = arith.constant 0 : index
    %16 = vector.load %arg8[%c0_15, %c0_16, %c0_17] : memref<2x8x1xf32, #tpu.memory_space<vmem>>, vector<2x8x1xf32>
    %cst_18 = arith.constant dense<0xFF800000> : vector<2x8xf32>
    %17 = vector.multi_reduction <maximumf>, %15, %cst_18 [2] : vector<2x8x8xf32> to vector<2x8xf32>
    %18 = vector.shape_cast %17 : vector<2x8xf32> to vector<2x8x1xf32>
    %19 = arith.maximumf %16, %18 : vector<2x8x1xf32>
    %20 = arith.subf %16, %19 : vector<2x8x1xf32>
    %21 = math.exp %20 : vector<2x8x1xf32>
    %22 = vector.broadcast %19 : vector<2x8x1xf32> to vector<2x8x8xf32>
    %23 = arith.subf %15, %22 : vector<2x8x8xf32>
    %24 = math.exp %23 : vector<2x8x8xf32>
    %c0_19 = arith.constant 0 : index
    %c0_20 = arith.constant 0 : index
    %c0_21 = arith.constant 0 : index
    %25 = vector.load %arg9[%c0_19, %c0_20, %c0_21] : memref<2x8x1xf32, #tpu.memory_space<vmem>>, vector<2x8x1xf32>
    %26 = arith.mulf %21, %25 : vector<2x8x1xf32>
    %cst_22 = arith.constant dense<0.000000e+00> : vector<2x8xf32>
    %27 = vector.multi_reduction <add>, %24, %cst_22 [2] : vector<2x8x8xf32> to vector<2x8xf32>
    %28 = vector.shape_cast %27 : vector<2x8xf32> to vector<2x8x1xf32>
    %29 = arith.addf %26, %28 : vector<2x8x1xf32>
    %c0_23 = arith.constant 0 : index
    %c0_24 = arith.constant 0 : index
    %c0_25 = arith.constant 0 : index
    %30 = vector.load %arg9[%c0_23, %c0_24, %c0_25] : memref<2x8x1xf32, #tpu.memory_space<vmem>>, vector<2x8x1xf32>
    tpu.vector_store %arg9[%c0_23, %c0_24, %c0_25], %29 {strides = array<i32>} : memref<2x8x1xf32, #tpu.memory_space<vmem>>, vector<2x8x1xf32>,
    %c0_26 = arith.constant 0 : index
    %c0_27 = arith.constant 0 : index
    %c0_28 = arith.constant 0 : index
    %31 = vector.load %arg10[%c0_26, %c0_27, %c0_28] : memref<2x8x16xf32, #tpu.memory_space<vmem>>, vector<2x8x16xf32>
    %32 = vector.broadcast %21 : vector<2x8x1xf32> to vector<2x8x16xf32>
    %33 = arith.mulf %32, %31 : vector<2x8x16xf32>
    "tpu.trace_start"() <{level = 10 : i32, message = "hqk,hkd->hqd"}> : () -> ()
    %cst_29 = arith.constant dense<0.000000e+00> : vector<2x8x16xf32>
    %34 = tpu.matmul %24, %10, %cst_29 {dimension_numbers = #tpu.dot_dimension_numbers<[2], [1], [1], [2], [0, 0, 0, 1, 1, 2], [0], [0]>} : vector<2x8x8xf32>, vector<2x8x16xf32>, vector<2x8x16xf32> -> vector<2x8x16xf32>
    "tpu.trace_stop"() : () -> ()
    %35 = arith.addf %33, %34 : vector<2x8x16xf32>
    %c0_30 = arith.constant 0 : index
    %c0_31 = arith.constant 0 : index
    %c0_32 = arith.constant 0 : index
    %36 = vector.load %arg10[%c0_30, %c0_31, %c0_32] : memref<2x8x16xf32, #tpu.memory_space<vmem>>, vector<2x8x16xf32>
    tpu.vector_store %arg10[%c0_30, %c0_31, %c0_32], %35 {strides = array<i32>} : memref<2x8x16xf32, #tpu.memory_space<vmem>>, vector<2x8x16xf32>,
    %c0_33 = arith.constant 0 : index
    %c0_34 = arith.constant 0 : index
    %c0_35 = arith.constant 0 : index
    %37 = vector.load %arg8[%c0_33, %c0_34, %c0_35] : memref<2x8x1xf32, #tpu.memory_space<vmem>>, vector<2x8x1xf32>
    tpu.vector_store %arg8[%c0_33, %c0_34, %c0_35], %19 {strides = array<i32>} : memref<2x8x1xf32, #tpu.memory_space<vmem>>, vector<2x8x1xf32>,
    %c0_i32_36 = arith.constant 0 : i32
    %38 = arith.cmpi eq, %arg2, %c0_i32_36 : i32
    %39 = arith.extui %38 : i1 to i32
    %c0_i32_37 = arith.constant 0 : i32
    %40 = arith.cmpi ne, %39, %c0_i32_37 : i32
    scf.if %40 {
      %c0_38 = arith.constant 0 : index
      %c0_39 = arith.constant 0 : index
      %c0_40 = arith.constant 0 : index
      %41 = vector.load %arg9[%c0_38, %c0_39, %c0_40] : memref<2x8x1xf32, #tpu.memory_space<vmem>>, vector<2x8x1xf32>
      %42 = tpu.reciprocal %41 {approx = true} : vector<2x8x1xf32> -> vector<2x8x1xf32>
      %c0_41 = arith.constant 0 : index
      %c0_42 = arith.constant 0 : index
      %c0_43 = arith.constant 0 : index
      %43 = vector.load %arg10[%c0_41, %c0_42, %c0_43] : memref<2x8x16xf32, #tpu.memory_space<vmem>>, vector<2x8x16xf32>
      %44 = vector.broadcast %42 : vector<2x8x1xf32> to vector<2x8x16xf32>
      %45 = arith.mulf %43, %44 : vector<2x8x16xf32>
      %46 = vector.extract_strided_slice %45 {offsets = [0, 0, 0], sizes = [1, 8, 16], strides = [1, 1, 1]} : vector<2x8x16xf32> to vector<1x8x16xf32>
      %47 = vector.shape_cast %46 : vector<1x8x16xf32> to vector<8x16xf32>
      %48 = vector.extract_strided_slice %45 {offsets = [1, 0, 0], sizes = [1, 8, 16], strides = [1, 1, 1]} : vector<2x8x16xf32> to vector<1x8x16xf32>
      %49 = vector.shape_cast %48 : vector<1x8x16xf32> to vector<8x16xf32>
      %50 = tpu.concatenate %47, %49 in 1 : vector<8x16xf32>, vector<8x16xf32> -> vector<8x32xf32>
      %c0_44 = arith.constant 0 : index
      %c0_45 = arith.constant 0 : index
      %c0_46 = arith.constant 0 : index
      %51 = vector.load %arg7[%c0_44, %c0_45, %c0_46] : memref<1x8x32xf32, #tpu.memory_space<vmem>>, vector<1x8x32xf32>
      %52 = vector.shape_cast %51 : vector<1x8x32xf32> to vector<8x32xf32>
      %53 = vector.shape_cast %50 : vector<8x32xf32> to vector<1x8x32xf32>
      tpu.vector_store %arg7[%c0_44, %c0_45, %c0_46], %53 {strides = array<i32>} : memref<1x8x32xf32, #tpu.memory_space<vmem>>, vector<1x8x32xf32>,
    } else {
    }
    return
  }
  func.func @transform_0(%arg0: i32, %arg1: i32, %arg2: i32) -> (i32, i32, i32, i32) {
    %c0_i32 = arith.constant 0 : i32
    %c0_i32_0 = arith.constant 0 : i32
    %c0_i32_1 = arith.constant 0 : i32
    return %arg0, %c0_i32, %arg1, %c0_i32_0 : i32, i32, i32, i32
  }
  func.func @transform_1(%arg0: i32, %arg1: i32, %arg2: i32) -> (i32, i32, i32, i32) {
    %c0_i32 = arith.constant 0 : i32
    %c0_i32_0 = arith.constant 0 : i32
    %c0_i32_1 = arith.constant 0 : i32
    return %arg0, %c0_i32, %arg2, %c0_i32_0 : i32, i32, i32, i32
  }
  func.func @transform_2(%arg0: i32, %arg1: i32, %arg2: i32) -> (i32, i32, i32, i32) {
    %c0_i32 = arith.constant 0 : i32
    %c0_i32_0 = arith.constant 0 : i32
    %c0_i32_1 = arith.constant 0 : i32
    return %arg0, %c0_i32, %arg2, %c0_i32_0 : i32, i32, i32, i32
  }
  func.func @transform_3(%arg0: i32, %arg1: i32, %arg2: i32) -> (i32, i32) {
    %c0_i32 = arith.constant 0 : i32
    return %arg1, %arg2 : i32, i32
  }
  func.func @transform_4(%arg0: i32, %arg1: i32, %arg2: i32) -> (i32, i32, i32) {
    %c0_i32 = arith.constant 0 : i32
    %c0_i32_0 = arith.constant 0 : i32
    return %arg0, %arg1, %c0_i32 : i32, i32, i32
  }
}

</mosaic_0001>

<llo_original>
// kernel: tpu_custom_call.1
$region0: #{tpu_custom_call.1}
  #allocation0 [shape = 'u32[]', space=smem, size = 0x4, offset = 0x4, fixed_abs, tag = 'smem constant byte address 0x4 - core index']
  #allocation1 [shape = 'u32[144,128]{1,0:T(1,128)}', space=vmem, size = 0x12000, scoped, tag = 'internal scratch']
  #allocation2 [shape = 'f32[2,8,1]{2,1,0:T(8,128)}', space=vmem, size = 0x2000, scoped, tag = 'scratch operand']
  #allocation3 [shape = 'f32[2,8,1]{2,1,0:T(8,128)}', space=vmem, size = 0x2000, scoped, tag = 'scratch operand']
  #allocation4 [shape = 'f32[2,8,16]{2,1,0:T(8,128)}', space=vmem, size = 0x2000, scoped, tag = 'scratch operand']
  %s0 = inlined_call_operand.hbm [shape: f32[2,2,8,16], index: 0, kind: input, shape index: {}]
  %s1 = inlined_call_operand.hbm [shape: f32[2,2,8,16], index: 1, kind: input, shape index: {}]
  %s2 = inlined_call_operand.hbm [shape: f32[2,2,8,16], index: 2, kind: input, shape index: {}]
  %s3 = inlined_call_operand.vmem [shape: f32[8,8], index: 3, kind: input, shape index: {}]
  %s4 = inlined_call_operand.hbm [shape: f32[2,8,32], index: 4, kind: output, shape index: {}]
  %s5 = sld [smem:[#allocation0]]
  $region69: #{tpu_custom_call.1} parent=0
    _
  %s7 = ssub.s32 1, %s5
  %s8 = scalar_select 0, %s7, %s5
  $region1: #{tpu_custom_call.1} parent=0
    #allocation5 [shape = 'u8[16384]{0}', space=vmem, size = 0x4000, scoped, tag = 'input window, operand 0']
    #allocation6 [shape = 's32[2]{0}', space=sflag, size = 0x8, scoped, tag = 'scoped memory for tpu_custom_call.1']
    #allocation7 [shape = 's32[2]{0}', space=sflag, size = 0x8, scoped, tag = 'scoped memory for tpu_custom_call.1']
    #allocation8 [shape = 'u8[16384]{0}', space=vmem, size = 0x4000, scoped, tag = 'input window, operand 1']
    #allocation9 [shape = 's32[2]{0}', space=sflag, size = 0x8, scoped, tag = 'scoped memory for tpu_custom_call.1']
    #allocation10 [shape = 'u8[16384]{0}', space=vmem, size = 0x4000, scoped, tag = 'input window, operand 2']
    #allocation11 [shape = 'u8[8192]{0}', space=vmem, size = 0x2000, scoped, tag = 'output window, operand 0']
    %9 = vsyncpa [#allocation6], 0
    %s10 = scalar_lea.sflag [#allocation6], 1
    %11 = vsyncpa %s10, 0
    %12 = vsyncpa [#allocation9], 0
    %s13 = scalar_lea.sflag [#allocation9], 1
    %14 = vsyncpa %s13, 0
    %15 = vsyncpa [#allocation7], 0
    %s16 = scalar_lea.sflag [#allocation7], 1
    %17 = vsyncpa %s16, 0
    loop: start=0, step=1, limit=4
    $region2: #{tpu_custom_call.1} parent=1 // loop_pre_header
      _
    $region3: #{tpu_custom_call.1} parent=1 // loop_header
      %s19 = sphi 0, %s23
      %p20 = scmp.ge.s32.totalorder %s19, 4
      %s26 = sphi 0, %s45
      %s27 = sphi 0, %s41
      %s28 = sphi 0, %s37
      %s29 = sphi 0, %s26
      %s30 = sphi 0, %s27
      %s31 = sphi 0, %s28
      %s32 = sphi 0, %s29
      %s33 = sphi 0, %s30
      %s34 = sphi 0, %s31
      %s50 = sphi 0, %s52
      %s53 = sphi 0, %s50
      %s54 = sphi 0, %s53
      %s70 = sphi 0, %s54
      %s78 = sphi 0, %s80
      %s81 = sphi 0, %s78
      %s82 = sphi 0, %s81
      %s98 = sphi 0, %s82
      %s106 = sphi 0, %s108
      %s109 = sphi 0, %s106
      %s110 = sphi 0, %s109
      %s126 = sphi 0, %s110
      %s134 = sphi 0, %s136
      %s137 = sphi 0, %s134
      %s138 = sphi 0, %s137
      %s154 = sphi 0, %s138
      %s162 = sphi 0, %s164
      %s165 = sphi 0, %s162
      %s166 = sphi 0, %s165
      %s182 = sphi 0, %s166
    $region4: #{tpu_custom_call.1} parent=1 // loop_header_branch
      %22 = sbr.rel (%p20) target = $region8
    $region5: #{tpu_custom_call.1} parent=1 // loop_body
      %s24 = ssub.s32 %s19, 1
      %s25 = ssub.s32 %s19, 2
      %s35 = sadd.s32 1, %s28
      %p36 = scmp.ge.s32.totalorder %s35, 1
      %s37 = scalar_select %p36, 0, %s35
      %s38 = sadd.s32 1, %s27
      %s39 = scalar_select %p36, %s38, %s27
      %p40 = scmp.ge.s32.totalorder %s39, 1
      %s41 = scalar_select %p40, 0, %s39
      %s42 = sadd.s32 1, %s26
      %s43 = scalar_select %p40, %s42, %s26
      %p44 = scmp.ge.s32.totalorder %s43, 2
      %s45 = scalar_select %p44, 0, %s43
      %s46 = ssub.s32 %s26, %s45
      %s47 = ssub.s32 %s27, %s41
      %s48 = sor.u32 %s46, %s47
      %p49 = scmp.eq.s32.totalorder %s48, 0
      %s51 = sadd.s32 %s50, 1
      %s52 = scalar_select %p49, %s50, %s51
      %p55 = pneg %p49
      %p56 = scmp.eq.s32.totalorder %s19, 1
      %p57 = por %p55, %p56
      %p58 = scmp.ne.s32.totalorder %s50, %s53
      %p59 = scmp.eq.s32.totalorder %s19, 0
      %p60 = por %p58, %p59
      %p61 = scmp.ne.s32.totalorder %s50, %s53
      %p62 = scmp.eq.s32.totalorder %s24, 1
      %p63 = por %p61, %p62
      %p64 = scmp.ne.s32.totalorder %s53, %s54
      %p65 = scmp.eq.s32.totalorder %s24, 0
      %p66 = por %p64, %p65
      %p67 = scmp.ne.s32.totalorder %s53, %s54
      %p68 = scmp.eq.s32.totalorder %s25, 1
      %p69 = por %p67, %p68
      %p71 = scmp.ne.s32.totalorder %s54, %s70
      %p72 = scmp.eq.s32.totalorder %s25, 0
      %p73 = por %p71, %p72
      %s74 = ssub.s32 %s26, %s45
      %s75 = ssub.s32 %s28, %s37
      %s76 = sor.u32 %s74, %s75
      %p77 = scmp.eq.s32.totalorder %s76, 0
      %s79 = sadd.s32 %s78, 1
      %s80 = scalar_select %p77, %s78, %s79
      %p83 = pneg %p77
      %p84 = scmp.eq.s32.totalorder %s19, 1
      %p85 = por %p83, %p84
      %p86 = scmp.ne.s32.totalorder %s78, %s81
      %p87 = scmp.eq.s32.totalorder %s19, 0
      %p88 = por %p86, %p87
      %p89 = scmp.ne.s32.totalorder %s78, %s81
      %p90 = scmp.eq.s32.totalorder %s24, 1
      %p91 = por %p89, %p90
      %p92 = scmp.ne.s32.totalorder %s81, %s82
      %p93 = scmp.eq.s32.totalorder %s24, 0
      %p94 = por %p92, %p93
      %p95 = scmp.ne.s32.totalorder %s81, %s82
      %p96 = scmp.eq.s32.totalorder %s25, 1
      %p97 = por %p95, %p96
      %p99 = scmp.ne.s32.totalorder %s82, %s98
      %p100 = scmp.eq.s32.totalorder %s25, 0
      %p101 = por %p99, %p100
      %s102 = ssub.s32 %s26, %s45
      %s103 = ssub.s32 %s28, %s37
      %s104 = sor.u32 %s102, %s103
      %p105 = scmp.eq.s32.totalorder %s104, 0
      %s107 = sadd.s32 %s106, 1
      %s108 = scalar_select %p105, %s106, %s107
      %p111 = pneg %p105
      %p112 = scmp.eq.s32.totalorder %s19, 1
      %p113 = por %p111, %p112
      %p114 = scmp.ne.s32.totalorder %s106, %s109
      %p115 = scmp.eq.s32.totalorder %s19, 0
      %p116 = por %p114, %p115
      %p117 = scmp.ne.s32.totalorder %s106, %s109
      %p118 = scmp.eq.s32.totalorder %s24, 1
      %p119 = por %p117, %p118
      %p120 = scmp.ne.s32.totalorder %s109, %s110
      %p121 = scmp.eq.s32.totalorder %s24, 0
      %p122 = por %p120, %p121
      %p123 = scmp.ne.s32.totalorder %s109, %s110
      %p124 = scmp.eq.s32.totalorder %s25, 1
      %p125 = por %p123, %p124
      %p127 = scmp.ne.s32.totalorder %s110, %s126
      %p128 = scmp.eq.s32.totalorder %s25, 0
      %p129 = por %p127, %p128
      %s130 = ssub.s32 %s27, %s41
      %s131 = ssub.s32 %s28, %s37
      %s132 = sor.u32 %s130, %s131
      %p133 = scmp.eq.s32.totalorder %s132, 0
      %s135 = sadd.s32 %s134, 1
      %s136 = scalar_select %p133, %s134, %s135
      %p139 = pneg %p133
      %p140 = scmp.eq.s32.totalorder %s19, 1
      %p141 = por %p139, %p140
      %p142 = scmp.ne.s32.totalorder %s134, %s137
      %p143 = scmp.eq.s32.totalorder %s19, 0
      %p144 = por %p142, %p143
      %p145 = scmp.ne.s32.totalorder %s134, %s137
      %p146 = scmp.eq.s32.totalorder %s24, 1
      %p147 = por %p145, %p146
      %p148 = scmp.ne.s32.totalorder %s137, %s138
      %p149 = scmp.eq.s32.totalorder %s24, 0
      %p150 = por %p148, %p149
      %p151 = scmp.ne.s32.totalorder %s137, %s138
      %p152 = scmp.eq.s32.totalorder %s25, 1
      %p153 = por %p151, %p152
      %p155 = scmp.ne.s32.totalorder %s138, %s154
      %p156 = scmp.eq.s32.totalorder %s25, 0
      %p157 = por %p155, %p156
      %s158 = ssub.s32 %s26, %s45
      %s159 = ssub.s32 %s27, %s41
      %s160 = sor.u32 %s158, %s159
      %p161 = scmp.eq.s32.totalorder %s160, 0
      %s163 = sadd.s32 %s162, 1
      %s164 = scalar_select %p161, %s162, %s163
      %p167 = pneg %p161
      %p168 = scmp.eq.s32.totalorder %s19, 1
      %p169 = por %p167, %p168
      %p170 = scmp.ne.s32.totalorder %s162, %s165
      %p171 = scmp.eq.s32.totalorder %s19, 0
      %p172 = por %p170, %p171
      %p173 = scmp.ne.s32.totalorder %s162, %s165
      %p174 = scmp.eq.s32.totalorder %s24, 1
      %p175 = por %p173, %p174
      %p176 = scmp.ne.s32.totalorder %s165, %s166
      %p177 = scmp.eq.s32.totalorder %s24, 0
      %p178 = por %p176, %p177
      %p179 = scmp.ne.s32.totalorder %s165, %s166
      %p180 = scmp.eq.s32.totalorder %s25, 1
      %p181 = por %p179, %p180
      %p183 = scmp.ne.s32.totalorder %s166, %s182
      %p184 = scmp.eq.s32.totalorder %s25, 0
      %p185 = por %p183, %p184
      %p186 = scmp.le.s32.totalorder 1, %s19
      %p187 = scmp.lt.s32.totalorder %s19, 3
      %p188 = pnand %p186, %p187
      %p189 = pneg %p188
      // Predicated region
      $region9: #{tpu_custom_call.1} parent=5 // pred_check
        _
      $region10: #{tpu_custom_call.1} parent=5 // pred_check_branch
        %191 = sbr.rel (%p188) target = $region12
      $region11: #{tpu_custom_call.1} parent=5 // pred_region
        %s192 = ssub.s32 %s19, 1
        // Predicated region
        $region13: #{tpu_custom_call.1} parent=11 // pred_check
          %p193 = pneg %p150
        $region14: #{tpu_custom_call.1} parent=11 // pred_check_branch
          %195 = sbr.rel (%p193) target = $region16
        $region15: #{tpu_custom_call.1} parent=11 // pred_region
          %p196 = scmp.lt.s32.totalorder %s30, 0
          %s197 = scalar_select %p196, %s30, 0
          %p198 = scmp.lt.s32.totalorder %s31, 0
          %s199 = scalar_select %p198, %s31, 0
          %s200 = sadd.s32 %s199, %s197
          %s201 = smul.addr %s200, 8
          %s202 = scalar_lea.vmem %s3, %s201
        $region16: #{tpu_custom_call.1} parent=11 // pred_fallthru
          _
      $region12: #{tpu_custom_call.1} parent=5 // pred_fallthru
        _
      %p203 = scmp.lt.s32.totalorder %s19, 2
      // Predicated region
      $region17: #{tpu_custom_call.1} parent=5 // pred_check
        %p204 = pneg %p203
      $region18: #{tpu_custom_call.1} parent=5 // pred_check_branch
        %206 = sbr.rel (%p204) target = $region20
      $region19: #{tpu_custom_call.1} parent=5 // pred_region
        // Predicated region
        $region21: #{tpu_custom_call.1} parent=19 // pred_check
          %p207 = pneg %p60
        $region22: #{tpu_custom_call.1} parent=19 // pred_check_branch
          %209 = sbr.rel (%p207) target = $region24
        $region23: #{tpu_custom_call.1} parent=19 // pred_region
          %s210 = sand.u32 %s50, 1
          %s211 = scalar_lea.sflag [#allocation6], %s210
          %s212 = sand.u32 %s50, 1
          %s213 = smul.addr %s212, 16
          %s214 = scalar_lea.vmem [#allocation5], %s213
          %s216 = ssub.s32 256, 256
          %217 = vsyncadd %s211, %s216
          %s218 = smul.addr %s26, 2
          %s219 = sadd.s32 %s27, %s218
          %s220 = smul.addr %s219, 128
          %s221 = scalar_lea.hbm %s0, %s220
          %s222 = sshll.u32 %s214, 4
          %s223 = int_to_ptr.vmem [resolvable:$true] %s222
          %228 = dma.hbm_to_vmem [thread:$0]  %s221, 256, %s223, %s211, 128, 128, 8
        $region24: #{tpu_custom_call.1} parent=19 // pred_fallthru
          _
        // Predicated region
        $region25: #{tpu_custom_call.1} parent=19 // pred_check
          %p229 = pneg %p88
        $region26: #{tpu_custom_call.1} parent=19 // pred_check_branch
          %231 = sbr.rel (%p229) target = $region28
        $region27: #{tpu_custom_call.1} parent=19 // pred_region
          %s232 = sand.u32 %s19, 1
          %s233 = scalar_lea.sflag [#allocation9], %s232
          %s234 = sand.u32 %s78, 1
          %s235 = smul.addr %s234, 16
          %s236 = scalar_lea.vmem [#allocation8], %s235
          %s238 = ssub.s32 256, 256
          %239 = vsyncadd %s233, %s238
          %s240 = smul.addr %s26, 2
          %s241 = sadd.s32 %s28, %s240
          %s242 = smul.addr %s241, 128
          %s243 = scalar_lea.hbm %s1, %s242
          %s244 = sshll.u32 %s236, 4
          %s245 = int_to_ptr.vmem [resolvable:$true] %s244
          %250 = dma.hbm_to_vmem [thread:$0]  %s243, 256, %s245, %s233, 128, 128, 8
        $region28: #{tpu_custom_call.1} parent=19 // pred_fallthru
          _
        // Predicated region
        $region29: #{tpu_custom_call.1} parent=19 // pred_check
          %p251 = pneg %p116
        $region30: #{tpu_custom_call.1} parent=19 // pred_check_branch
          %253 = sbr.rel (%p251) target = $region32
        $region31: #{tpu_custom_call.1} parent=19 // pred_region
          %s254 = sand.u32 %s19, 1
          %s255 = scalar_lea.sflag [#allocation9], %s254
          %s256 = sand.u32 %s106, 1
          %s257 = smul.addr %s256, 16
          %s258 = scalar_lea.vmem [#allocation10], %s257
          %s260 = ssub.s32 256, 256
          %261 = vsyncadd %s255, %s260
          %s262 = smul.addr %s26, 2
          %s263 = sadd.s32 %s28, %s262
          %s264 = smul.addr %s263, 128
          %s265 = scalar_lea.hbm %s2, %s264
          %s266 = sshll.u32 %s258, 4
          %s267 = int_to_ptr.vmem [resolvable:$true] %s266
          %272 = dma.hbm_to_vmem [thread:$0]  %s265, 256, %s267, %s255, 128, 128, 8
        $region32: #{tpu_custom_call.1} parent=19 // pred_fallthru
          _
      $region20: #{tpu_custom_call.1} parent=5 // pred_fallthru
        _
      %p273 = scmp.le.s32.totalorder 1, %s19
      %p274 = scmp.lt.s32.totalorder %s19, 3
      %p275 = pnand %p273, %p274
      %p276 = pneg %p275
      // Predicated region
      $region33: #{tpu_custom_call.1} parent=5 // pred_check
        _
      $region34: #{tpu_custom_call.1} parent=5 // pred_check_branch
        %278 = sbr.rel (%p275) target = $region36
      $region35: #{tpu_custom_call.1} parent=5 // pred_region
        %s279 = ssub.s32 %s19, 1
        %s280 = sand.u32 %s53, 1
        %s281 = scalar_lea.sflag [#allocation6], %s280
        %s282 = sand.u32 %s53, 1
        %s283 = smul.addr %s282, 16
        %s284 = scalar_lea.vmem [#allocation5], %s283
        // Predicated region
        $region37: #{tpu_custom_call.1} parent=35 // pred_check
          %p285 = pneg %p66
        $region38: #{tpu_custom_call.1} parent=35 // pred_check_branch
          %287 = sbr.rel (%p285) target = $region40
        $region39: #{tpu_custom_call.1} parent=35 // pred_region
          %288 = dma.done %s281, 256
        $region40: #{tpu_custom_call.1} parent=35 // pred_fallthru
          _
        %s289 = sand.u32 %s24, 1
        %s290 = scalar_lea.sflag [#allocation9], %s289
        %s291 = sand.u32 %s81, 1
        %s292 = smul.addr %s291, 16
        %s293 = scalar_lea.vmem [#allocation8], %s292
        // Predicated region
        $region41: #{tpu_custom_call.1} parent=35 // pred_check
          %p294 = pneg %p94
        $region42: #{tpu_custom_call.1} parent=35 // pred_check_branch
          %296 = sbr.rel (%p294) target = $region44
        $region43: #{tpu_custom_call.1} parent=35 // pred_region
          %297 = dma.done %s290, 256
        $region44: #{tpu_custom_call.1} parent=35 // pred_fallthru
          _
        %s298 = sand.u32 %s24, 1
        %s299 = scalar_lea.sflag [#allocation9], %s298
        %s300 = sand.u32 %s109, 1
        %s301 = smul.addr %s300, 16
        %s302 = scalar_lea.vmem [#allocation10], %s301
        // Predicated region
        $region45: #{tpu_custom_call.1} parent=35 // pred_check
          %p303 = pneg %p122
        $region46: #{tpu_custom_call.1} parent=35 // pred_check_branch
          %305 = sbr.rel (%p303) target = $region48
        $region47: #{tpu_custom_call.1} parent=35 // pred_region
          %306 = dma.done %s299, 256
        $region48: #{tpu_custom_call.1} parent=35 // pred_fallthru
          _
        %s307 = sand.u32 %s53, 1
        %s308 = scalar_lea.sflag [#allocation6], %s307
        %s309 = sand.u32 %s53, 1
        %s310 = smul.addr %s309, 16
        %s311 = scalar_lea.vmem [#allocation5], %s310
        %p312 = pneg %p66
        %p313 = pneg %p63
        %s314 = sand.u32 %s24, 1
        %s315 = scalar_lea.sflag [#allocation9], %s314
        %s316 = sand.u32 %s81, 1
        %s317 = smul.addr %s316, 16
        %s318 = scalar_lea.vmem [#allocation8], %s317
        %p319 = pneg %p94
        %p320 = pneg %p91
        %s321 = sand.u32 %s24, 1
        %s322 = scalar_lea.sflag [#allocation9], %s321
        %s323 = sand.u32 %s109, 1
        %s324 = smul.addr %s323, 16
        %s325 = scalar_lea.vmem [#allocation10], %s324
        %p326 = pneg %p122
        %p327 = pneg %p119
        %p328 = scmp.lt.s32.totalorder %s30, 0
        %s329 = scalar_select %p328, %s30, 0
        %p330 = scmp.lt.s32.totalorder %s31, 0
        %s331 = scalar_select %p330, %s31, 0
        %s332 = sadd.s32 %s331, %s329
        %s333 = smul.addr %s332, 8
        %s334 = scalar_lea.vmem %s3, %s333
        %p335 = pneg %p150
        %p336 = pneg %p147
        %p337 = pneg %p178
        %p338 = pneg %p175
        %s339 = sand.u32 %s165, 1
        %s340 = scalar_lea.sflag [#allocation7], %s339
        %s341 = sand.u32 %s165, 1
        %s342 = smul.addr %s341, 8
        %s343 = scalar_lea.vmem [#allocation11], %s342
        %p344 = scmp.lt.s32.totalorder %s30, 0
        %s345 = scalar_select %p344, %s30, 0
        %p346 = scmp.lt.s32.totalorder %s31, 0
        %s347 = scalar_select %p346, %s31, 0
        %s348 = sadd.s32 %s347, %s345
        %s349 = smul.addr %s348, 8
        %s350 = scalar_lea.vmem %s3, %s349
        %p351 = scmp.eq.s32.totalorder %s31, 0
        // Predicated region
        $region49: #{tpu_custom_call.1} parent=35 // pred_check
          %p352 = pneg %p351
        $region50: #{tpu_custom_call.1} parent=35 // pred_check_branch
          %354 = sbr.rel (%p352) target = $region52
        $region51: #{tpu_custom_call.1} parent=35 // pred_region
          %vm355 = vcmask 7168
          %356 = vst.msk [vmem:[#allocation2] sm:$0xff] %vm355, -inf
          %357 = vst.msk [vmem:[#allocation2 + $0x8] sm:$0xff] %vm355, -inf
          %358 = vst.msk [vmem:[#allocation3] sm:$0xff] %vm355, 0.0
          %359 = vst.msk [vmem:[#allocation3 + $0x8] sm:$0xff] %vm355, 0.0
          %vm360 = vcmask 130048
          %361 = vst.msk [vmem:[#allocation4] sm:$0xff] %vm360, 0.0
          %362 = vst.msk [vmem:[#allocation4 + $0x8] sm:$0xff] %vm360, 0.0
        $region52: #{tpu_custom_call.1} parent=35 // pred_fallthru
          _
        %v363 = vld [vmem:[%s284] sm:$0xff]
        %v364 = vld [vmem:[%s284 + $0x8] sm:$0xff]
        %v365 = vmul.f32 %v363, 0.25
        %v366 = vmul.f32 %v364, 0.25
        %v367 = vld [vmem:[%s293] sm:$0xff]
        %v368 = vld [vmem:[%s293 + $0x8] sm:$0xff]
        %v369 = vld [vmem:[%s302] sm:$0xff]
        %v370 = vld [vmem:[%s302 + $0x8] sm:$0xff]
        %v371 = vld [vmem:[%s350] sm:$0xff]
        %vm372 = vcmask 130048
        %v374 = vsel %vm372, %v365, 0
        %v377 = vsel %vm372, %v367, 0
        %379 = vmatprep.subr.mxu0 0.0
        %380 = vmatpush1.xpose.msra.mxu0 %v377
        %381 = vmatprep.subr.mxu0 0.0
        %382 = vmatpush1.xpose.msra.mxu0 0.0
        %383 = vmatprep.subr.mxu0 0.0
        %384 = vmatpush1.xpose.msra.mxu0 0.0
        %385 = vmatprep.subr.mxu0 0.0
        %386 = vmatpush1.xpose.msra.mxu0 0.0
        %387 = vmatprep.subr.mxu0 0.0
        %388 = vmatpush1.xpose.msra.mxu0 0.0
        %389 = vmatprep.subr.mxu0 0.0
        %390 = vmatpush1.xpose.msra.mxu0 0.0
        %391 = vmatprep.subr.mxu0 0.0
        %392 = vmatpush1.xpose.msra.mxu0 0.0
        %393 = vmatprep.subr.mxu0 0.0
        %394 = vmatpush1.xpose.msra.mxu0 0.0
        %395 = vmatprep.subr.mxu0 0.0
        %396 = vmatpush1.xpose.msra.mxu0 0.0
        %397 = vmatprep.subr.mxu0 0.0
        %398 = vmatpush1.xpose.msra.mxu0 0.0
        %399 = vmatprep.subr.mxu0 0.0
        %400 = vmatpush1.xpose.msra.mxu0 0.0
        %401 = vmatprep.subr.mxu0 0.0
        %402 = vmatpush1.xpose.msra.mxu0 0.0
        %403 = vmatprep.subr.mxu0 0.0
        %404 = vmatpush1.xpose.msra.mxu0 0.0
        %405 = vmatprep.subr.mxu0 0.0
        %406 = vmatpush1.xpose.msra.mxu0 0.0
        %407 = vmatprep.subr.mxu0 0.0
        %408 = vmatpush1.xpose.msra.mxu0 0.0
        %409 = vmatprep.subr.mxu0 0.0
        %410 = vmatpush1.xpose.msra.mxu0 0.0
        %411 = vmatprep.subr.mxu0 0.0
        %412 = vmatpush1.xpose.msra.mxu0 0.0
        %413 = vmatprep.subr.mxu0 0.0
        %414 = vmatpush1.xpose.msra.mxu0 0.0
        %415 = vmatprep.subr.mxu0 0.0
        %416 = vmatpush1.xpose.msra.mxu0 0.0
        %417 = vmatprep.subr.mxu0 0.0
        %418 = vmatpush1.xpose.msra.mxu0 0.0
        %419 = vmatprep.subr.mxu0 0.0
        %420 = vmatpush1.xpose.msra.mxu0 0.0
        %421 = vmatprep.subr.mxu0 0.0
        %422 = vmatpush1.xpose.msra.mxu0 0.0
        %423 = vmatprep.subr.mxu0 0.0
        %424 = vmatpush1.xpose.msra.mxu0 0.0
        %425 = vmatprep.subr.mxu0 0.0
        %426 = vmatpush1.xpose.msra.mxu0 0.0
        %427 = vmatprep.subr.mxu0 0.0
        %428 = vmatpush1.xpose.msra.mxu0 0.0
        %429 = vmatprep.subr.mxu0 0.0
        %430 = vmatpush1.xpose.msra.mxu0 0.0
        %431 = vmatprep.subr.mxu0 0.0
        %432 = vmatpush1.xpose.msra.mxu0 0.0
        %433 = vmatprep.subr.mxu0 0.0
        %434 = vmatpush1.xpose.msra.mxu0 0.0
        %435 = vmatprep.subr.mxu0 0.0
        %436 = vmatpush1.xpose.msra.mxu0 0.0
        %437 = vmatprep.subr.mxu0 0.0
        %438 = vmatpush1.xpose.msra.mxu0 0.0
        %439 = vmatprep.subr.mxu0 0.0
        %440 = vmatpush1.xpose.msra.mxu0 0.0
        %441 = vmatprep.subr.mxu0 0.0
        %442 = vmatpush1.xpose.msra.mxu0 0.0
        %443 = vmatprep.mubr.f32.mxu0 0.0
        %444 = vmatmul.mubr.f32.gmra.mrb[0].mxu0 %v374
        %v445 = vpop.f32.mrb[0].mxu0
        %v446 = vadd.f32 %v371, %v445
        %v447 = vpop.f32.mrb[0].mxu0
        %448 = vdwg.mxu0
        %v450 = vsel %vm372, %v366, 0
        %v453 = vsel %vm372, %v368, 0
        %455 = vmatprep.subr.mxu0 0.0
        %456 = vmatpush1.xpose.msra.mxu0 %v453
        %457 = vmatprep.subr.mxu0 0.0
        %458 = vmatpush1.xpose.msra.mxu0 0.0
        %459 = vmatprep.subr.mxu0 0.0
        %460 = vmatpush1.xpose.msra.mxu0 0.0
        %461 = vmatprep.subr.mxu0 0.0
        %462 = vmatpush1.xpose.msra.mxu0 0.0
        %463 = vmatprep.subr.mxu0 0.0
        %464 = vmatpush1.xpose.msra.mxu0 0.0
        %465 = vmatprep.subr.mxu0 0.0
        %466 = vmatpush1.xpose.msra.mxu0 0.0
        %467 = vmatprep.subr.mxu0 0.0
        %468 = vmatpush1.xpose.msra.mxu0 0.0
        %469 = vmatprep.subr.mxu0 0.0
        %470 = vmatpush1.xpose.msra.mxu0 0.0
        %471 = vmatprep.subr.mxu0 0.0
        %472 = vmatpush1.xpose.msra.mxu0 0.0
        %473 = vmatprep.subr.mxu0 0.0
        %474 = vmatpush1.xpose.msra.mxu0 0.0
        %475 = vmatprep.subr.mxu0 0.0
        %476 = vmatpush1.xpose.msra.mxu0 0.0
        %477 = vmatprep.subr.mxu0 0.0
        %478 = vmatpush1.xpose.msra.mxu0 0.0
        %479 = vmatprep.subr.mxu0 0.0
        %480 = vmatpush1.xpose.msra.mxu0 0.0
        %481 = vmatprep.subr.mxu0 0.0
        %482 = vmatpush1.xpose.msra.mxu0 0.0
        %483 = vmatprep.subr.mxu0 0.0
        %484 = vmatpush1.xpose.msra.mxu0 0.0
        %485 = vmatprep.subr.mxu0 0.0
        %486 = vmatpush1.xpose.msra.mxu0 0.0
        %487 = vmatprep.subr.mxu0 0.0
        %488 = vmatpush1.xpose.msra.mxu0 0.0
        %489 = vmatprep.subr.mxu0 0.0
        %490 = vmatpush1.xpose.msra.mxu0 0.0
        %491 = vmatprep.subr.mxu0 0.0
        %492 = vmatpush1.xpose.msra.mxu0 0.0
        %493 = vmatprep.subr.mxu0 0.0
        %494 = vmatpush1.xpose.msra.mxu0 0.0
        %495 = vmatprep.subr.mxu0 0.0
        %496 = vmatpush1.xpose.msra.mxu0 0.0
        %497 = vmatprep.subr.mxu0 0.0
        %498 = vmatpush1.xpose.msra.mxu0 0.0
        %499 = vmatprep.subr.mxu0 0.0
        %500 = vmatpush1.xpose.msra.mxu0 0.0
        %501 = vmatprep.subr.mxu0 0.0
        %502 = vmatpush1.xpose.msra.mxu0 0.0
        %503 = vmatprep.subr.mxu0 0.0
        %504 = vmatpush1.xpose.msra.mxu0 0.0
        %505 = vmatprep.subr.mxu0 0.0
        %506 = vmatpush1.xpose.msra.mxu0 0.0
        %507 = vmatprep.subr.mxu0 0.0
        %508 = vmatpush1.xpose.msra.mxu0 0.0
        %509 = vmatprep.subr.mxu0 0.0
        %510 = vmatpush1.xpose.msra.mxu0 0.0
        %511 = vmatprep.subr.mxu0 0.0
        %512 = vmatpush1.xpose.msra.mxu0 0.0
        %513 = vmatprep.subr.mxu0 0.0
        %514 = vmatpush1.xpose.msra.mxu0 0.0
        %515 = vmatprep.subr.mxu0 0.0
        %516 = vmatpush1.xpose.msra.mxu0 0.0
        %517 = vmatprep.subr.mxu0 0.0
        %518 = vmatpush1.xpose.msra.mxu0 0.0
        %519 = vmatprep.mubr.f32.mxu0 0.0
        %520 = vmatmul.mubr.f32.gmra.mrb[0].mxu0 %v450
        %v521 = vpop.f32.mrb[0].mxu0
        %v522 = vadd.f32 %v371, %v521
        %v523 = vpop.f32.mrb[0].mxu0
        %524 = vdwg.mxu0
        %v525 = vld [vmem:[#allocation2] sm:$0xff]
        %v526 = vld [vmem:[#allocation2 + $0x8] sm:$0xff]
        %vm527 = vcmask 64512
        %v528 = vsel %vm527, %v446, -inf
        %529 = vmax.xlane.f32.xlu0 %v528
        %v530 = vpop.xlane.xlu0 %529
        %v531 = vsel %vm527, %v522, -inf
        %532 = vmax.xlane.f32.xlu0 %v531
        %v533 = vpop.xlane.xlu0 %532
        %v534 = vmax.f32 %v525, %v530
        %v535 = vmax.f32 %v526, %v533
        %v536 = vsub.f32 %v525, %v534
        %v537 = vsub.f32 %v526, %v535
        %v538 = vmul.f32 %v536, 1.442695
        %v539 = vpow.pop %v538
        %v540 = vmul.f32 %v537, 1.442695
        %v541 = vpow.pop %v540
        %543 = vset.pattern.permute.xlu0 0
        %544 = vperm.xlu0 %543, %v534
        %v545 = vpop.permute.xlu0 %544
        %548 = vset.pattern.permute.xlu0 0
        %549 = vperm.xlu0 %548, %v535
        %v550 = vpop.permute.xlu0 %549
        %v552 = vsub.f32 %v446, %v545
        %v553 = vsub.f32 %v522, %v550
        %v554 = vmul.f32 %v552, 1.442695
        %v555 = vpow.pop %v554
        %v556 = vmul.f32 %v553, 1.442695
        %v557 = vpow.pop %v556
        %v558 = vld [vmem:[#allocation3] sm:$0xff]
        %v559 = vld [vmem:[#allocation3 + $0x8] sm:$0xff]
        %v560 = vmul.f32 %v539, %v558
        %v561 = vmul.f32 %v541, %v559
        %v562 = vsel %vm527, %v555, 0.0
        %563 = vadd.xlane.f32.xlu0 %v562
        %v564 = vpop.xlane.xlu0 %563
        %v565 = vsel %vm527, %v557, 0.0
        %566 = vadd.xlane.f32.xlu0 %v565
        %v567 = vpop.xlane.xlu0 %566
        %v568 = vadd.f32 %v560, %v564
        %v569 = vadd.f32 %v561, %v567
        %vm570 = vcmask 7168
        %571 = vst.msk [vmem:[#allocation3] sm:$0xff] %vm570, %v568
        %572 = vst.msk [vmem:[#allocation3 + $0x8] sm:$0xff] %vm570, %v569
        %v573 = vld [vmem:[#allocation4] sm:$0xff]
        %v574 = vld [vmem:[#allocation4 + $0x8] sm:$0xff]
        %576 = vset.pattern.permute.xlu0 0
        %577 = vperm.xlu0 %576, %v539
        %v578 = vpop.permute.xlu0 %577
        %581 = vset.pattern.permute.xlu0 0
        %582 = vperm.xlu0 %581, %v541
        %v583 = vpop.permute.xlu0 %582
        %v585 = vmul.f32 %v578, %v573
        %v586 = vmul.f32 %v583, %v574
        %v588 = vsel %vm527, %v555, 0
        %590 = vmatprep.subr.mxu0 0.0
        %591 = vmatpush1.msra.mxu0 %v369
        %592 = vmatprep.subr.mxu0 0.0
        %593 = vmatpush1.msra.mxu0 0.0
        %594 = vmatprep.subr.mxu0 0.0
        %595 = vmatpush1.msra.mxu0 0.0
        %596 = vmatprep.subr.mxu0 0.0
        %597 = vmatpush1.msra.mxu0 0.0
        %598 = vmatprep.subr.mxu0 0.0
        %599 = vmatpush1.msra.mxu0 0.0
        %600 = vmatprep.subr.mxu0 0.0
        %601 = vmatpush1.msra.mxu0 0.0
        %602 = vmatprep.subr.mxu0 0.0
        %603 = vmatpush1.msra.mxu0 0.0
        %604 = vmatprep.subr.mxu0 0.0
        %605 = vmatpush1.msra.mxu0 0.0
        %606 = vmatprep.subr.mxu0 0.0
        %607 = vmatpush1.msra.mxu0 0.0
        %608 = vmatprep.subr.mxu0 0.0
        %609 = vmatpush1.msra.mxu0 0.0
        %610 = vmatprep.subr.mxu0 0.0
        %611 = vmatpush1.msra.mxu0 0.0
        %612 = vmatprep.subr.mxu0 0.0
        %613 = vmatpush1.msra.mxu0 0.0
        %614 = vmatprep.subr.mxu0 0.0
        %615 = vmatpush1.msra.mxu0 0.0
        %616 = vmatprep.subr.mxu0 0.0
        %617 = vmatpush1.msra.mxu0 0.0
        %618 = vmatprep.subr.mxu0 0.0
        %619 = vmatpush1.msra.mxu0 0.0
        %620 = vmatprep.subr.mxu0 0.0
        %621 = vmatpush1.msra.mxu0 0.0
        %622 = vmatprep.subr.mxu0 0.0
        %623 = vmatpush1.msra.mxu0 0.0
        %624 = vmatprep.subr.mxu0 0.0
        %625 = vmatpush1.msra.mxu0 0.0
        %626 = vmatprep.subr.mxu0 0.0
        %627 = vmatpush1.msra.mxu0 0.0
        %628 = vmatprep.subr.mxu0 0.0
        %629 = vmatpush1.msra.mxu0 0.0
        %630 = vmatprep.subr.mxu0 0.0
        %631 = vmatpush1.msra.mxu0 0.0
        %632 = vmatprep.subr.mxu0 0.0
        %633 = vmatpush1.msra.mxu0 0.0
        %634 = vmatprep.subr.mxu0 0.0
        %635 = vmatpush1.msra.mxu0 0.0
        %636 = vmatprep.subr.mxu0 0.0
        %637 = vmatpush1.msra.mxu0 0.0
        %638 = vmatprep.subr.mxu0 0.0
        %639 = vmatpush1.msra.mxu0 0.0
        %640 = vmatprep.subr.mxu0 0.0
        %641 = vmatpush1.msra.mxu0 0.0
        %642 = vmatprep.subr.mxu0 0.0
        %643 = vmatpush1.msra.mxu0 0.0
        %644 = vmatprep.subr.mxu0 0.0
        %645 = vmatpush1.msra.mxu0 0.0
        %646 = vmatprep.subr.mxu0 0.0
        %647 = vmatpush1.msra.mxu0 0.0
        %648 = vmatprep.subr.mxu0 0.0
        %649 = vmatpush1.msra.mxu0 0.0
        %650 = vmatprep.subr.mxu0 0.0
        %651 = vmatpush1.msra.mxu0 0.0
        %652 = vmatprep.subr.mxu0 0.0
        %653 = vmatpush1.msra.mxu0 0.0
        %654 = vmatprep.mubr.f32.mxu0 0.0
        %655 = vmatmul.mubr.f32.gmra.mrb[0].mxu0 %v588
        %v656 = vpop.f32.mrb[0].mxu0
        %v657 = vadd.f32 0.0, %v656
        %v658 = vpop.f32.mrb[0].mxu0
        %659 = vdwg.mxu0
        %v661 = vsel %vm527, %v557, 0
        %663 = vmatprep.subr.mxu0 0.0
        %664 = vmatpush1.msra.mxu0 %v370
        %665 = vmatprep.subr.mxu0 0.0
        %666 = vmatpush1.msra.mxu0 0.0
        %667 = vmatprep.subr.mxu0 0.0
        %668 = vmatpush1.msra.mxu0 0.0
        %669 = vmatprep.subr.mxu0 0.0
        %670 = vmatpush1.msra.mxu0 0.0
        %671 = vmatprep.subr.mxu0 0.0
        %672 = vmatpush1.msra.mxu0 0.0
        %673 = vmatprep.subr.mxu0 0.0
        %674 = vmatpush1.msra.mxu0 0.0
        %675 = vmatprep.subr.mxu0 0.0
        %676 = vmatpush1.msra.mxu0 0.0
        %677 = vmatprep.subr.mxu0 0.0
        %678 = vmatpush1.msra.mxu0 0.0
        %679 = vmatprep.subr.mxu0 0.0
        %680 = vmatpush1.msra.mxu0 0.0
        %681 = vmatprep.subr.mxu0 0.0
        %682 = vmatpush1.msra.mxu0 0.0
        %683 = vmatprep.subr.mxu0 0.0
        %684 = vmatpush1.msra.mxu0 0.0
        %685 = vmatprep.subr.mxu0 0.0
        %686 = vmatpush1.msra.mxu0 0.0
        %687 = vmatprep.subr.mxu0 0.0
        %688 = vmatpush1.msra.mxu0 0.0
        %689 = vmatprep.subr.mxu0 0.0
        %690 = vmatpush1.msra.mxu0 0.0
        %691 = vmatprep.subr.mxu0 0.0
        %692 = vmatpush1.msra.mxu0 0.0
        %693 = vmatprep.subr.mxu0 0.0
        %694 = vmatpush1.msra.mxu0 0.0
        %695 = vmatprep.subr.mxu0 0.0
        %696 = vmatpush1.msra.mxu0 0.0
        %697 = vmatprep.subr.mxu0 0.0
        %698 = vmatpush1.msra.mxu0 0.0
        %699 = vmatprep.subr.mxu0 0.0
        %700 = vmatpush1.msra.mxu0 0.0
        %701 = vmatprep.subr.mxu0 0.0
        %702 = vmatpush1.msra.mxu0 0.0
        %703 = vmatprep.subr.mxu0 0.0
        %704 = vmatpush1.msra.mxu0 0.0
        %705 = vmatprep.subr.mxu0 0.0
        %706 = vmatpush1.msra.mxu0 0.0
        %707 = vmatprep.subr.mxu0 0.0
        %708 = vmatpush1.msra.mxu0 0.0
        %709 = vmatprep.subr.mxu0 0.0
        %710 = vmatpush1.msra.mxu0 0.0
        %711 = vmatprep.subr.mxu0 0.0
        %712 = vmatpush1.msra.mxu0 0.0
        %713 = vmatprep.subr.mxu0 0.0
        %714 = vmatpush1.msra.mxu0 0.0
        %715 = vmatprep.subr.mxu0 0.0
        %716 = vmatpush1.msra.mxu0 0.0
        %717 = vmatprep.subr.mxu0 0.0
        %718 = vmatpush1.msra.mxu0 0.0
        %719 = vmatprep.subr.mxu0 0.0
        %720 = vmatpush1.msra.mxu0 0.0
        %721 = vmatprep.subr.mxu0 0.0
        %722 = vmatpush1.msra.mxu0 0.0
        %723 = vmatprep.subr.mxu0 0.0
        %724 = vmatpush1.msra.mxu0 0.0
        %725 = vmatprep.subr.mxu0 0.0
        %726 = vmatpush1.msra.mxu0 0.0
        %727 = vmatprep.mubr.f32.mxu0 0.0
        %728 = vmatmul.mubr.f32.gmra.mrb[0].mxu0 %v661
        %v729 = vpop.f32.mrb[0].mxu0
        %v730 = vadd.f32 0.0, %v729
        %v731 = vpop.f32.mrb[0].mxu0
        %732 = vdwg.mxu0
        %v733 = vadd.f32 %v585, %v657
        %v734 = vadd.f32 %v586, %v730
        %735 = vst.msk [vmem:[#allocation4] sm:$0xff] %vm372, %v733
        %736 = vst.msk [vmem:[#allocation4 + $0x8] sm:$0xff] %vm372, %v734
        %737 = vst.msk [vmem:[#allocation2] sm:$0xff] %vm570, %v534
        %738 = vst.msk [vmem:[#allocation2 + $0x8] sm:$0xff] %vm570, %v535
        // Predicated region
        $region53: #{tpu_custom_call.1} parent=35 // pred_check
          %p739 = pneg %p351
        $region54: #{tpu_custom_call.1} parent=35 // pred_check_branch
          %741 = sbr.rel (%p739) target = $region56
        $region55: #{tpu_custom_call.1} parent=35 // pred_region
          %v742 = vld [vmem:[#allocation3] sm:$0xff]
          %v743 = vld [vmem:[#allocation3 + $0x8] sm:$0xff]
          %v744 = vrcp.pop %v742
          %v745 = vrcp.pop %v743
          %v746 = vld [vmem:[#allocation4] sm:$0xff]
          %v747 = vld [vmem:[#allocation4 + $0x8] sm:$0xff]
          %749 = vset.pattern.permute.xlu0 0
          %750 = vperm.xlu0 %749, %v744
          %v751 = vpop.permute.xlu0 %750
          %754 = vset.pattern.permute.xlu0 0
          %755 = vperm.xlu0 %754, %v745
          %v756 = vpop.permute.xlu0 %755
          %v758 = vmul.f32 %v746, %v751
          %v759 = vmul.f32 %v747, %v756
          %761 = vrot.lane.b32.xlu0 %v759, 16
          %v762 = vpop.permute.xlu0 %761
          %v764 = vsel %vm372, %v758, %v762
          %vm765 = vcmask 261120
          %766 = vst.msk [vmem:[%s343] sm:$0xff] %vm765, %v764
        $region56: #{tpu_custom_call.1} parent=35 // pred_fallthru
          _
        %s767 = sand.u32 %s165, 1
        %s768 = scalar_lea.sflag [#allocation7], %s767
        %s769 = sand.u32 %s165, 1
        %s770 = smul.addr %s769, 8
        %s771 = scalar_lea.vmem [#allocation11], %s770
        // Predicated region
        $region57: #{tpu_custom_call.1} parent=35 // pred_check
          %p772 = pneg %p175
        $region58: #{tpu_custom_call.1} parent=35 // pred_check_branch
          %774 = sbr.rel (%p772) target = $region60
        $region59: #{tpu_custom_call.1} parent=35 // pred_region
          %s776 = ssub.s32 128, 128
          %777 = vsyncadd %s768, %s776
          %s778 = sadd.s32 %s30, %s29
          %s779 = smul.addr %s778, 128
          %s780 = scalar_lea.hbm %s4, %s779
          %s782 = sshll.u32 %s771, 4
          %s783 = int_to_ptr.vmem [resolvable:$true] %s782
          %785 = dma.vmem_to_hbm [thread:$0]  %s783, 128, %s780, %s768
        $region60: #{tpu_custom_call.1} parent=35 // pred_fallthru
          _
      $region36: #{tpu_custom_call.1} parent=5 // pred_fallthru
        _
      %p786 = scmp.le.s32.totalorder 2, %s19
      // Predicated region
      $region61: #{tpu_custom_call.1} parent=5 // pred_check
        %p787 = pneg %p786
      $region62: #{tpu_custom_call.1} parent=5 // pred_check_branch
        %789 = sbr.rel (%p787) target = $region64
      $region63: #{tpu_custom_call.1} parent=5 // pred_region
        %s790 = ssub.s32 %s19, 2
        // Predicated region
        $region65: #{tpu_custom_call.1} parent=63 // pred_check
          %p791 = pneg %p181
        $region66: #{tpu_custom_call.1} parent=63 // pred_check_branch
          %793 = sbr.rel (%p791) target = $region68
        $region67: #{tpu_custom_call.1} parent=63 // pred_region
          %s794 = sand.u32 %s166, 1
          %s795 = scalar_lea.sflag [#allocation7], %s794
          %s796 = sand.u32 %s166, 1
          %s797 = smul.addr %s796, 8
          %s798 = scalar_lea.vmem [#allocation11], %s797
          %799 = dma.done %s795, 128
        $region68: #{tpu_custom_call.1} parent=63 // pred_fallthru
          _
      $region64: #{tpu_custom_call.1} parent=5 // pred_fallthru
        _
    $region6: #{tpu_custom_call.1} parent=1 // loop_footer
      %s23 = sadd.s32 1, %s19
    $region7: #{tpu_custom_call.1} parent=1 // loop_footer_branch
      %18 = sbr.rel target = $region3
    $region8: #{tpu_custom_call.1} parent=1 // loop_exit
      _
    %800 = vsyncpa [#allocation6], 1
    %s801 = scalar_lea.sflag [#allocation6], 1
    %802 = vsyncpa %s801, 1
    %803 = vsyncpa [#allocation9], 1
    %s804 = scalar_lea.sflag [#allocation9], 1
    %805 = vsyncpa %s804, 1
    %806 = vsyncpa [#allocation7], 1
    %s807 = scalar_lea.sflag [#allocation7], 1
    %808 = vsyncpa %s807, 1

</llo_original>
